<compile_context>
chip_gen: v6e
topology: v6e:2x2x1
jax: 0.10.0
libtpu: 0.0.40
codegen_flags: <defaults>
</compile_context>

<pallas_src>
import functools

import jax
import jax.numpy as jnp
from jax.experimental import pallas as pl
from jax.experimental.pallas import tpu as pltpu


# ----------------------------------------------------------------------------
# Generation-aware tuning constants
# ----------------------------------------------------------------------------
def _detect_vmem_bytes():
    """Per-TensorCore VMEM capacity; conservative 64 MiB fallback (v7x)."""
    try:
        v = int(pltpu.get_tpu_info().vmem_capacity_bytes)
        if v > 0:
            return v
    except Exception:
        pass
    try:
        kind = jax.devices()[0].device_kind.lower()
        if "v5" in kind or "v6" in kind:
            return 128 << 20
    except Exception:
        pass
    return 64 << 20


_VMEM_BYTES = _detect_vmem_bytes()
_SMALL_VMEM = _VMEM_BYTES <= (64 << 20)   # v7x-like (also proxy for 2 TensorCores)

if _SMALL_VMEM:                            # v7x: 64 MiB VMEM, ~3.2 TB/s HBM
    _TARGET_BLOCK_BYTES = 4 << 20          # bigger blocks: step overhead fraction halves
    _FUSED_MAX_SAMPLE_BYTES = 8 << 20      # keep fused footprint well under 64 MiB
    _FUSED_VMEM_CAP = 44 << 20
    _TWO_PASS_VMEM_LIMIT = 24 << 20        # pass 2: ~4x block (double-buffered in+out)
else:                                      # v5e / v6e: 128 MiB VMEM
    _TARGET_BLOCK_BYTES = 8 << 20
    _FUSED_MAX_SAMPLE_BYTES = 22 << 20     # widen the 1-read fused window
    _FUSED_VMEM_CAP = 100 << 20
    _TWO_PASS_VMEM_LIMIT = 48 << 20

_MAX_S_TILE = 8192                         # lanes per block (caps inner unroll at 64 chunks)


# ----------------------------------------------------------------------------
# Kernels
# ----------------------------------------------------------------------------
def _fused_kernel(x_ref, w_ref, b_ref, o_ref, *, inv_s):
    """Grid = (N,). Whole (C, S) sample resident: pool + conv + sigmoid + multiply.

    The pooled sum accumulates in f32 without materializing a full f32 copy of
    the slab, and the broadcast multiply stays in the input dtype.
    """
    xb = x_ref[...]                                                    # (C, S) native dtype
    mean = jnp.sum(xb, axis=-1, keepdims=True, dtype=jnp.float32) * inv_s   # (C, 1) f32
    logits = jnp.dot(w_ref[...], mean,
                     preferred_element_type=jnp.float32) + b_ref[...]       # (C, 1)
    gate = jax.nn.sigmoid(logits).astype(o_ref.dtype)                       # (C, 1)
    o_ref[...] = (xb * gate).astype(o_ref.dtype)


def _pool_chunk_kernel(x_ref, psum_ref, *, s_tile, s_total):
    """Grid = (R//rt, cdiv(S, s_tile)).  Lane-dense (rt, 128) partial sums.

    Loads (and f32-casts) one 128-lane chunk at a time; the tail mask is built
    only for chunks that can cross the valid boundary and is active only on the
    single partial tail block.  Output block stays resident across the
    'arbitrary' spatial axis.
    """
    s_idx = pl.program_id(1)

    @pl.when(s_idx == 0)
    def _():
        psum_ref[...] = jnp.zeros_like(psum_ref)

    n_chunks = s_tile // 128
    tail = s_total % s_tile                      # static; 0 => every block is full
    is_last = s_idx == pl.num_programs(1) - 1

    acc = psum_ref[...]                                              # (rt, 128) f32
    for i in range(n_chunks):                                        # static, unrolled
        chunk = x_ref[:, i * 128:(i + 1) * 128].astype(jnp.float32)  # (rt, 128)
        if tail and (i + 1) * 128 > tail:
            # This chunk contains out-of-range lanes in the (only) tail block.
            lane = jax.lax.broadcasted_iota(jnp.int32, chunk.shape, 1)
            invalid = jnp.logical_and(is_last, lane >= (tail - i * 128))
            chunk = jnp.where(invalid, 0.0, chunk)
        acc = acc + chunk
    psum_ref[...] = acc


def _pool_sum_kernel(x_ref, psum_ref):
    """Grid = (R//rt,). Fallback for small S that is not a multiple of 128."""
    psum_ref[...] = jnp.sum(x_ref[...], axis=-1, keepdims=True, dtype=jnp.float32)


def _apply_gate_kernel(x_ref, g_ref, o_ref):
    """Grid = (R//rt, cdiv(S, s_tile)). out = x * gate, in the input dtype."""
    g = g_ref[...].astype(x_ref.dtype)                               # (rt, 1)
    o_ref[...] = (x_ref[...] * g).astype(o_ref.dtype)


# ----------------------------------------------------------------------------
# Tiling helpers
# ----------------------------------------------------------------------------
def _pick_rows_tile(num_rows, row_bytes, target_bytes):
    rt = target_bytes // max(int(row_bytes), 1)
    rt = max(8, min(1024, (rt // 8) * 8))        # multiple of 8 (f32 sublanes)
    if rt >= num_rows:
        return int(num_rows)                     # full extent is always legal
    return int(rt)


def _pick_s_tile(s):
    """Balanced spatial tiling: near-equal blocks, multiple of 128 lanes."""
    if s <= _MAX_S_TILE:
        if s % 128 == 0:
            return s, True
        return s, False                          # small, unaligned S -> fallback kernel
    num_s = -(-s // _MAX_S_TILE)
    base = -(-s // num_s)
    s_tile = -(-base // 128) * 128               # <= _MAX_S_TILE by construction
    return s_tile, True


# ----------------------------------------------------------------------------
# Wrappers
# ----------------------------------------------------------------------------
def _se_gating_fused(xf, w2, b1, padded_sample_bytes):
    """One kernel: x read once.  Grid over samples ('parallel' for megacore)."""
    N, C, S = xf.shape
    vmem_limit = int(min(4 * padded_sample_bytes + (8 << 20), _FUSED_VMEM_CAP))
    return pl.pallas_call(
        functools.partial(_fused_kernel, inv_s=1.0 / float(S)),
        out_shape=jax.ShapeDtypeStruct((N, C, S), xf.dtype),
        grid_spec=pltpu.PrefetchScalarGridSpec(
            num_scalar_prefetch=0,
            grid=(N,),
            in_specs=[
                pl.BlockSpec((None, C, S), lambda n: (n, 0, 0)),
                pl.BlockSpec((C, C), lambda n: (0, 0)),
                pl.BlockSpec((C, 1), lambda n: (0, 0)),
            ],
            out_specs=pl.BlockSpec((None, C, S), lambda n: (n, 0, 0)),
        ),
        compiler_params=pltpu.CompilerParams(
            dimension_semantics=("parallel",),
            vmem_limit_bytes=vmem_limit),
    )(xf, w2, b1.reshape(C, 1))


def _se_gating_two_pass(xr, w2, b1, n, c):
    """(N*C, S) row layout, big generation-sized tiles; conv + sigmoid in plain JAX."""
    R, S = xr.shape
    elt = xr.dtype.itemsize

    s_tile, use_chunk = _pick_s_tile(S)
    rows_tile = _pick_rows_tile(R, s_tile * elt, _TARGET_BLOCK_BYTES)
    grid_r = pl.cdiv(R, rows_tile)
    grid_s = pl.cdiv(S, s_tile)

    # ---- Pass 1: pooled (partial) sums, lane-dense output --------------------
    if use_chunk:
        psums = pl.pallas_call(
            functools.partial(_pool_chunk_kernel, s_tile=s_tile, s_total=S),
            out_shape=jax.ShapeDtypeStruct((R, 128), jnp.float32),
            grid_spec=pltpu.PrefetchScalarGridSpec(
                num_scalar_prefetch=0,
                grid=(grid_r, grid_s),
                in_specs=[pl.BlockSpec((rows_tile, s_tile), lambda r, s: (r, s))],
                out_specs=pl.BlockSpec((rows_tile, 128), lambda r, s: (r, 0)),
            ),
            compiler_params=pltpu.CompilerParams(
                dimension_semantics=("parallel", "arbitrary"),
                vmem_limit_bytes=_TWO_PASS_VMEM_LIMIT),
        )(xr)
    else:
        psums = pl.pallas_call(
            _pool_sum_kernel,
            out_shape=jax.ShapeDtypeStruct((R, 1), jnp.float32),
            grid_spec=pltpu.PrefetchScalarGridSpec(
                num_scalar_prefetch=0,
                grid=(grid_r,),
                in_specs=[pl.BlockSpec((rows_tile, S), lambda r: (r, 0))],
                out_specs=pl.BlockSpec((rows_tile, 1), lambda r: (r, 0)),
            ),
            compiler_params=pltpu.CompilerParams(
                dimension_semantics=("parallel",),
                vmem_limit_bytes=_TWO_PASS_VMEM_LIMIT),
        )(xr)

    # ---- Tiny (N, C) conv + sigmoid in plain JAX (no in-kernel MXU needed) ---
    mean = (jnp.sum(psums, axis=-1) / float(S)).reshape(n, c)          # (N, C)
    gate = jax.nn.sigmoid(mean @ w2.T + b1[None, :])                   # (N, C)
    gate_r = gate.reshape(R, 1)

    # ---- Pass 2: broadcast multiply (native dtype, lane-dense blocks) --------
    out = pl.pallas_call(
        _apply_gate_kernel,
        out_shape=jax.ShapeDtypeStruct((R, S), xr.dtype),
        grid_spec=pltpu.PrefetchScalarGridSpec(
            num_scalar_prefetch=0,
            grid=(grid_r, grid_s),
            in_specs=[pl.BlockSpec((rows_tile, s_tile), lambda r, s: (r, s)),
                      pl.BlockSpec((rows_tile, 1), lambda r, s: (r, 0))],
            out_specs=pl.BlockSpec((rows_tile, s_tile), lambda r, s: (r, s)),
        ),
        compiler_params=pltpu.CompilerParams(
            dimension_semantics=("parallel", "parallel"),
            vmem_limit_bytes=_TWO_PASS_VMEM_LIMIT),
    )(xr, gate_r)
    return out


@functools.partial(jax.jit, static_argnames=("force_two_pass",))
def se_gating(x, w, b, *, force_two_pass=False):
    """x: (N, C, D, H, W); w: (C_out, C_in) 1x1x1 Conv3d weight; b: (C,)."""
    N, C, D, H, W = x.shape
    S = D * H * W
    xf = x.reshape(N, C, S)
    w2 = w.reshape(C, C).astype(jnp.float32)
    b1 = b.reshape(C).astype(jnp.float32)

    # Real VMEM footprint of a (C, S) block includes (8, 128) tile padding.
    elt = x.dtype.itemsize
    pad_c = -(-C // 8) * 8
    pad_s = -(-S // 128) * 128
    padded_sample_bytes = pad_c * pad_s * elt

    use_fused = (not force_two_pass) and padded_sample_bytes <= _FUSED_MAX_SAMPLE_BYTES
    if use_fused and _SMALL_VMEM and N < 2 and padded_sample_bytes > (2 << 20):
        # v7x-like chips have 2 TensorCores: a single-program fused grid leaves
        # one core (and ~half the HBM bandwidth) idle for large N=1 samples.
        use_fused = False

    if use_fused:
        out = _se_gating_fused(xf, w2, b1, padded_sample_bytes)
    else:
        out = _se_gating_two_pass(xf.reshape(N * C, S), w2, b1, N, C)
    return out.reshape(N, C, D, H, W)


# ----------------------------------------------------------------------------
# Self-test
# ----------------------------------------------------------------------------
if __name__ == "__main__":
    key = jax.random.PRNGKey(0)
    k_x, k_w, k_b, k_x2, k_x3 = jax.random.split(key, 5)

    def reference(x, w, b):
        pooled = jnp.mean(x, axis=(2, 3, 4))                    # (N, C)
        gate = jax.nn.sigmoid(pooled @ w.T + b)                 # (N, C)
        return x * gate[:, :, None, None, None]

    # Case A: small sample -> fused single-pass kernel.
    N, C, D, H, W = 2, 4, 4, 8, 8
    x = jax.random.normal(k_x, (N, C, D, H, W), dtype=jnp.float32)
    w = jax.random.normal(k_w, (C, C), dtype=jnp.float32) * 0.1
    b = jax.random.normal(k_b, (C,), dtype=jnp.float32) * 0.1
    ref = reference(x, w, b)
    out = jax.block_until_ready(se_gating(x, w, b))
    assert out.shape == x.shape and out.dtype == x.dtype
    assert jnp.allclose(out, ref, atol=1e-5, rtol=1e-5), "fused path mismatch"

    # Case B: same input via the two-pass (pool + apply) path, aligned S.
    out_b = jax.block_until_ready(se_gating(x, w, b, force_two_pass=True))
    assert jnp.allclose(out_b, ref, atol=1e-5, rtol=1e-5), "two-pass path mismatch"

    # Case C: two-pass with S > s_tile and a masked (non-divisible) tail block.
    N2, C2, D2, H2, W2 = 1, 8, 5, 41, 45          # S = 9225
    x2 = jax.random.normal(k_x2, (N2, C2, D2, H2, W2), dtype=jnp.float32)
    w8 = jax.random.normal(k_w, (C2, C2), dtype=jnp.float32) * 0.1
    b8 = jax.random.normal(k_b, (C2,), dtype=jnp.float32) * 0.1
    ref_c = reference(x2, w8, b8)
    out_c = jax.block_until_ready(se_gating(x2, w8, b8, force_two_pass=True))
    assert jnp.allclose(out_c, ref_c, atol=1e-5, rtol=1e-5), "masked-tail mismatch"
    out_c2 = jax.block_until_ready(se_gating(x2, w8, b8))     # fused path, same input
    assert jnp.allclose(out_c2, ref_c, atol=1e-5, rtol=1e-5), "fused (C=8) mismatch"

    # Case D: two-pass fallback for small S not a multiple of 128.
    x3 = jax.random.normal(k_x3, (1, 8, 3, 5, 5), dtype=jnp.float32)  # S = 75
    ref_d = reference(x3, w8, b8)
    out_d = jax.block_until_ready(se_gating(x3, w8, b8, force_two_pass=True))
    assert jnp.allclose(out_d, ref_d, atol=1e-5, rtol=1e-5), "small-S fallback mismatch"

    print("KERNEL_OK")
</pallas_src>

<mosaic_0001>
module attributes {stable_mosaic.version = 11 : i64} {
  func.func @_fused_kernel(%arg0: i32, %arg1: memref<1x4x256xf32, #tpu.memory_space<vmem>>, %arg2: memref<4x4xf32, #tpu.memory_space<vmem>>, %arg3: memref<4x1xf32, #tpu.memory_space<vmem>>, %arg4: memref<1x4x256xf32, #tpu.memory_space<vmem>>) attributes {dimension_semantics = [#tpu.dimension_semantics<parallel>], iteration_bounds = array<i64: 2>, scalar_prefetch = 0 : i64, scratch_operands = 0 : i64, tpu.core_type = #tpu.core_type<tc>, window_params = [{transform_indices = @transform_0, window_bounds = array<i64: 1, 4, 256>}, {pipeline_mode = #tpu.pipeline_mode<synchronous>, transform_indices = @transform_1, window_bounds = array<i64: 4, 4>}, {pipeline_mode = #tpu.pipeline_mode<synchronous>, transform_indices = @transform_2, window_bounds = array<i64: 4, 1>}, {transform_indices = @transform_3, window_bounds = array<i64: 1, 4, 256>}]} {
    %c0 = arith.constant 0 : index
    %c0_0 = arith.constant 0 : index
    %c0_1 = arith.constant 0 : index
    %0 = vector.load %arg1[%c0, %c0_0, %c0_1] : memref<1x4x256xf32, #tpu.memory_space<vmem>>, vector<1x4x256xf32>
    %1 = vector.shape_cast %0 : vector<1x4x256xf32> to vector<4x256xf32>
    %cst = arith.constant dense<0.000000e+00> : vector<4xf32>
    %2 = vector.multi_reduction <add>, %1, %cst [1] : vector<4x256xf32> to vector<4xf32>
    %3 = vector.shape_cast %2 : vector<4xf32> to vector<4x1xf32>
    %cst_2 = arith.constant 3.906250e-03 : f32
    %4 = vector.broadcast %cst_2 : f32 to vector<4x1xf32>
    %5 = arith.mulf %3, %4 : vector<4x1xf32>
    %c0_3 = arith.constant 0 : index
    %c0_4 = arith.constant 0 : index
    %6 = vector.load %arg2[%c0_3, %c0_4] : memref<4x4xf32, #tpu.memory_space<vmem>>, vector<4x4xf32>
    %cst_5 = arith.constant dense<0.000000e+00> : vector<4x1xf32>
    %7 = tpu.matmul %6, %5, %cst_5 {dimension_numbers = #tpu.dot_dimension_numbers<[1], [0], [0], [1], [0, 0, 1, 1], [], []>} : vector<4x4xf32>, vector<4x1xf32>, vector<4x1xf32> -> vector<4x1xf32>
    %c0_6 = arith.constant 0 : index
    %c0_7 = arith.constant 0 : index
    %8 = vector.load %arg3[%c0_6, %c0_7] : memref<4x1xf32, #tpu.memory_space<vmem>>, vector<4x1xf32>
    %9 = arith.addf %7, %8 : vector<4x1xf32>
    %10 = arith.negf %9 : vector<4x1xf32>
    %11 = math.exp %10 : vector<4x1xf32>
    %cst_8 = arith.constant 1.000000e+00 : f32
    %12 = vector.broadcast %cst_8 : f32 to vector<4x1xf32>
    %13 = arith.addf %12, %11 : vector<4x1xf32>
    %14 = arith.divf %12, %13 : vector<4x1xf32>
    %15 = vector.broadcast %14 : vector<4x1xf32> to vector<4x256xf32>
    %16 = arith.mulf %1, %15 : vector<4x256xf32>
    %c0_9 = arith.constant 0 : index
    %c0_10 = arith.constant 0 : index
    %c0_11 = arith.constant 0 : index
    %17 = vector.load %arg4[%c0_9, %c0_10, %c0_11] : memref<1x4x256xf32, #tpu.memory_space<vmem>>, vector<1x4x256xf32>
    %18 = vector.shape_cast %17 : vector<1x4x256xf32> to vector<4x256xf32>
    %19 = vector.shape_cast %16 : vector<4x256xf32> to vector<1x4x256xf32>
    tpu.vector_store %arg4[%c0_9, %c0_10, %c0_11], %19 {strides = array<i32>} : memref<1x4x256xf32, #tpu.memory_space<vmem>>, vector<1x4x256xf32>,
    return
  }
  func.func @transform_0(%arg0: i32) -> (i32, i32, i32) {
    %c0_i32 = arith.constant 0 : i32
    %c0_i32_0 = arith.constant 0 : i32
    %c0_i32_1 = arith.constant 0 : i32
    return %arg0, %c0_i32, %c0_i32_0 : i32, i32, i32
  }
  func.func @transform_1(%arg0: i32) -> (i32, i32) {
    %c0_i32 = arith.constant 0 : i32
    %c0_i32_0 = arith.constant 0 : i32
    %c0_i32_1 = arith.constant 0 : i32
    return %c0_i32, %c0_i32_0 : i32, i32
  }
  func.func @transform_2(%arg0: i32) -> (i32, i32) {
    %c0_i32 = arith.constant 0 : i32
    %c0_i32_0 = arith.constant 0 : i32
    %c0_i32_1 = arith.constant 0 : i32
    return %c0_i32, %c0_i32_0 : i32, i32
  }
  func.func @transform_3(%arg0: i32) -> (i32, i32, i32) {
    %c0_i32 = arith.constant 0 : i32
    %c0_i32_0 = arith.constant 0 : i32
    %c0_i32_1 = arith.constant 0 : i32
    return %arg0, %c0_i32, %c0_i32_0 : i32, i32, i32
  }
}

</mosaic_0001>

<llo_original>
// kernel: se_gating.1
$region0: #{se_gating.1}
  #allocation0 [shape = 'u32[]', space=smem, size = 0x4, offset = 0x4, fixed_abs, tag = 'smem constant byte address 0x4 - core index']
  #allocation1 [shape = 'u32[144,128]{1,0:T(1,128)}', space=vmem, size = 0x12000, scoped, tag = 'internal scratch']
  %s0 = inlined_call_operand.vmem [shape: f32[2,4,256], index: 0, kind: input, shape index: {}]
  %s1 = inlined_call_operand.vmem [shape: f32[4,4], index: 1, kind: input, shape index: {}]
  %s2 = inlined_call_operand.vmem [shape: f32[4,1], index: 2, kind: input, shape index: {}]
  %s3 = inlined_call_operand.vmem [shape: f32[2,4,256], index: 3, kind: output, shape index: {}]
  %s4 = sld [smem:[#allocation0]]
  $region45: #{se_gating.1} parent=0
    _
  %s6 = ssub.s32 1, %s4
  %s7 = scalar_select 0, %s6, %s4
  loop: start=0, step=1, limit=4
  $region2: #{se_gating.1} parent=0 // loop_pre_header
    _
  $region3: #{se_gating.1} parent=0 // loop_header
    %s9 = sphi 0, %s13
    %p10 = scmp.ge.s32.totalorder %s9, 4
    %s19 = sphi 0, %s21
    %s22 = sphi 0, %s19
    %s23 = sphi 0, %s22
    %s39 = sphi 0, %s23
    %s43 = sphi 0, %s43
    %s45 = sphi 0, %s43
    %s46 = sphi 0, %s45
    %s60 = sphi 0, %s46
    %s64 = sphi 0, %s64
    %s66 = sphi 0, %s64
    %s67 = sphi 0, %s66
    %s81 = sphi 0, %s67
    %s87 = sphi 0, %s89
    %s90 = sphi 0, %s87
    %s91 = sphi 0, %s90
    %s107 = sphi 0, %s91
  $region4: #{se_gating.1} parent=0 // loop_header_branch
    %12 = sbr.rel (%p10) target = $region8
  $region5: #{se_gating.1} parent=0 // loop_body
    %s14 = ssub.s32 %s9, 1
    %s15 = ssub.s32 %s9, 2
    %s16 = sadd.s32 %s9, 1
    %s17 = ssub.s32 %s9, %s16
    %p18 = scmp.eq.s32.totalorder %s17, 0
    %s20 = sadd.s32 %s19, 1
    %s21 = scalar_select %p18, %s19, %s20
    %p24 = pneg %p18
    %p25 = scmp.eq.s32.totalorder %s9, 1
    %p26 = por %p24, %p25
    %p27 = scmp.ne.s32.totalorder %s19, %s22
    %p28 = scmp.eq.s32.totalorder %s9, 0
    %p29 = por %p27, %p28
    %p30 = scmp.ne.s32.totalorder %s19, %s22
    %p31 = scmp.eq.s32.totalorder %s14, 1
    %p32 = por %p30, %p31
    %p33 = scmp.ne.s32.totalorder %s22, %s23
    %p34 = scmp.eq.s32.totalorder %s14, 0
    %p35 = por %p33, %p34
    %p36 = scmp.ne.s32.totalorder %s22, %s23
    %p37 = scmp.eq.s32.totalorder %s15, 1
    %p38 = por %p36, %p37
    %p40 = scmp.ne.s32.totalorder %s23, %s39
    %p41 = scmp.eq.s32.totalorder %s15, 0
    %p42 = por %p40, %p41
    %s44 = sadd.s32 %s43, 1
    %p47 = scmp.eq.s32.totalorder %s9, 1
    %p48 = scmp.ne.s32.totalorder %s43, %s45
    %p49 = scmp.eq.s32.totalorder %s9, 0
    %p50 = por %p48, %p49
    %p51 = scmp.ne.s32.totalorder %s43, %s45
    %p52 = scmp.eq.s32.totalorder %s14, 1
    %p53 = por %p51, %p52
    %p54 = scmp.ne.s32.totalorder %s45, %s46
    %p55 = scmp.eq.s32.totalorder %s14, 0
    %p56 = por %p54, %p55
    %p57 = scmp.ne.s32.totalorder %s45, %s46
    %p58 = scmp.eq.s32.totalorder %s15, 1
    %p59 = por %p57, %p58
    %p61 = scmp.ne.s32.totalorder %s46, %s60
    %p62 = scmp.eq.s32.totalorder %s15, 0
    %p63 = por %p61, %p62
    %s65 = sadd.s32 %s64, 1
    %p68 = scmp.eq.s32.totalorder %s9, 1
    %p69 = scmp.ne.s32.totalorder %s64, %s66
    %p70 = scmp.eq.s32.totalorder %s9, 0
    %p71 = por %p69, %p70
    %p72 = scmp.ne.s32.totalorder %s64, %s66
    %p73 = scmp.eq.s32.totalorder %s14, 1
    %p74 = por %p72, %p73
    %p75 = scmp.ne.s32.totalorder %s66, %s67
    %p76 = scmp.eq.s32.totalorder %s14, 0
    %p77 = por %p75, %p76
    %p78 = scmp.ne.s32.totalorder %s66, %s67
    %p79 = scmp.eq.s32.totalorder %s15, 1
    %p80 = por %p78, %p79
    %p82 = scmp.ne.s32.totalorder %s67, %s81
    %p83 = scmp.eq.s32.totalorder %s15, 0
    %p84 = por %p82, %p83
    %s85 = ssub.s32 %s9, %s16
    %p86 = scmp.eq.s32.totalorder %s85, 0
    %s88 = sadd.s32 %s87, 1
    %s89 = scalar_select %p86, %s87, %s88
    %p92 = pneg %p86
    %p93 = scmp.eq.s32.totalorder %s9, 1
    %p94 = por %p92, %p93
    %p95 = scmp.ne.s32.totalorder %s87, %s90
    %p96 = scmp.eq.s32.totalorder %s9, 0
    %p97 = por %p95, %p96
    %p98 = scmp.ne.s32.totalorder %s87, %s90
    %p99 = scmp.eq.s32.totalorder %s14, 1
    %p100 = por %p98, %p99
    %p101 = scmp.ne.s32.totalorder %s90, %s91
    %p102 = scmp.eq.s32.totalorder %s14, 0
    %p103 = por %p101, %p102
    %p104 = scmp.ne.s32.totalorder %s90, %s91
    %p105 = scmp.eq.s32.totalorder %s15, 1
    %p106 = por %p104, %p105
    %p108 = scmp.ne.s32.totalorder %s91, %s107
    %p109 = scmp.eq.s32.totalorder %s15, 0
    %p110 = por %p108, %p109
    %p111 = scmp.le.s32.totalorder 1, %s9
    %p112 = scmp.lt.s32.totalorder %s9, 3
    %p113 = pnand %p111, %p112
    %p114 = pneg %p113
    // Predicated region
    $region9: #{se_gating.1} parent=5 // pred_check
      _
    $region10: #{se_gating.1} parent=5 // pred_check_branch
      %116 = sbr.rel (%p113) target = $region12
    $region11: #{se_gating.1} parent=5 // pred_region
      %s117 = ssub.s32 %s9, 1
      // Predicated region
      $region13: #{se_gating.1} parent=11 // pred_check
        %p118 = pneg %p56
      $region14: #{se_gating.1} parent=11 // pred_check_branch
        %120 = sbr.rel (%p118) target = $region16
      $region15: #{se_gating.1} parent=11 // pred_region
        _
      $region16: #{se_gating.1} parent=11 // pred_fallthru
        _
      // Predicated region
      $region17: #{se_gating.1} parent=11 // pred_check
        %p121 = pneg %p77
      $region18: #{se_gating.1} parent=11 // pred_check_branch
        %123 = sbr.rel (%p121) target = $region20
      $region19: #{se_gating.1} parent=11 // pred_region
        _
      $region20: #{se_gating.1} parent=11 // pred_fallthru
        _
    $region12: #{se_gating.1} parent=5 // pred_fallthru
      _
    %p124 = scmp.lt.s32.totalorder %s9, 2
    // Predicated region
    $region21: #{se_gating.1} parent=5 // pred_check
      %p125 = pneg %p124
    $region22: #{se_gating.1} parent=5 // pred_check_branch
      %127 = sbr.rel (%p125) target = $region24
    $region23: #{se_gating.1} parent=5 // pred_region
      // Predicated region
      $region25: #{se_gating.1} parent=23 // pred_check
        %p128 = pneg %p29
      $region26: #{se_gating.1} parent=23 // pred_check_branch
        %130 = sbr.rel (%p128) target = $region28
      $region27: #{se_gating.1} parent=23 // pred_region
        %p131 = scmp.lt.s32.totalorder %s9, 1
        %s132 = scalar_select %p131, %s9, 1
        %s133 = smul.addr %s132, 2
        %s134 = smul.addr %s133, 4
        %s135 = scalar_lea.vmem %s0, %s134
      $region28: #{se_gating.1} parent=23 // pred_fallthru
        _
    $region24: #{se_gating.1} parent=5 // pred_fallthru
      _
    %p136 = scmp.le.s32.totalorder 1, %s9
    %p137 = scmp.lt.s32.totalorder %s9, 3
    %p138 = pnand %p136, %p137
    %p139 = pneg %p138
    // Predicated region
    $region29: #{se_gating.1} parent=5 // pred_check
      _
    $region30: #{se_gating.1} parent=5 // pred_check_branch
      %141 = sbr.rel (%p138) target = $region32
    $region31: #{se_gating.1} parent=5 // pred_region
      %s142 = ssub.s32 %s9, 1
      %p143 = scmp.lt.s32.totalorder %s14, 1
      %s144 = scalar_select %p143, %s14, 1
      %s145 = smul.addr %s144, 2
      %s146 = smul.addr %s145, 4
      %s147 = scalar_lea.vmem %s0, %s146
      %p148 = pneg %p35
      %p149 = pneg %p32
      %p150 = pneg %p56
      %p151 = pneg %p53
      %p152 = pneg %p77
      %p153 = pneg %p74
      %p154 = pneg %p103
      %p155 = pneg %p100
      %p156 = scmp.lt.s32.totalorder %s14, 1
      %s157 = scalar_select %p156, %s14, 1
      %s158 = smul.addr %s157, 2
      %s159 = smul.addr %s158, 4
      %s160 = scalar_lea.vmem %s3, %s159
      %p161 = scmp.lt.s32.totalorder %s14, 1
      %s162 = scalar_select %p161, %s14, 1
      %s163 = smul.addr %s162, 2
      %s164 = smul.addr %s163, 4
      %s165 = scalar_lea.vmem %s0, %s164
      %p166 = scmp.lt.s32.totalorder %s14, 1
      %s167 = scalar_select %p166, %s14, 1
      %s168 = smul.addr %s167, 2
      %s169 = smul.addr %s168, 4
      %s170 = scalar_lea.vmem %s3, %s169
      %v171 = vld [vmem:[%s165] sm:$0xff]
      %v173 = vcombine.high %v171, %v171
      %vm175 = vcmask 1043456
      %v176 = vsel %vm175, %v171, 0.0
      %v177 = vsel %vm175, %v173, 0.0
      %v178 = vadd.f32 %v176, %v177
      %179 = vadd.xlane.f32.xlu0 %v178
      %v180 = vpop.xlane.xlu0 %179
      %v181 = vmul.f32 %v180, 0.00390625
      %v182 = vld [vmem:[%s1] sm:$0xf]
      %v183 = vld [vmem:[%s2] sm:$0xf]
      %vm184 = vcmask 31744
      %v186 = vsel %vm184, %v182, 0
      %v189 = vsel %vm175, %v181, 0
      %191 = vmatprep.subr.mxu0 0.0
      %192 = vmatpush1.msra.mxu0 0.0
      %193 = vmatprep.subr.mxu0 0.0
      %194 = vmatpush1.msra.mxu0 0.0
      %195 = vmatprep.subr.mxu0 0.0
      %196 = vmatpush1.msra.mxu0 0.0
      %197 = vmatprep.subr.mxu0 0.0
      %198 = vmatpush1.msra.mxu0 0.0
      %199 = vmatprep.subr.mxu0 0.0
      %200 = vmatpush1.msra.mxu0 0.0
      %201 = vmatprep.subr.mxu0 0.0
      %202 = vmatpush1.msra.mxu0 0.0
      %203 = vmatprep.subr.mxu0 0.0
      %204 = vmatpush1.msra.mxu0 0.0
      %205 = vmatprep.subr.mxu0 0.0
      %206 = vmatpush1.msra.mxu0 0.0
      %207 = vmatprep.subr.mxu0 0.0
      %208 = vmatpush1.msra.mxu0 0.0
      %209 = vmatprep.subr.mxu0 0.0
      %210 = vmatpush1.msra.mxu0 0.0
      %211 = vmatprep.subr.mxu0 0.0
      %212 = vmatpush1.msra.mxu0 0.0
      %213 = vmatprep.subr.mxu0 0.0
      %214 = vmatpush1.msra.mxu0 0.0
      %215 = vmatprep.subr.mxu0 0.0
      %216 = vmatpush1.msra.mxu0 0.0
      %217 = vmatprep.subr.mxu0 0.0
      %218 = vmatpush1.msra.mxu0 0.0
      %219 = vmatprep.subr.mxu0 0.0
      %220 = vmatpush1.msra.mxu0 0.0
      %221 = vmatprep.subr.mxu0 0.0
      %222 = vmatpush1.msra.mxu0 %v189
      %223 = vmatprep.subr.mxu0 0.0
      %224 = vmatpush2.msra.mxu0 0.0
      %225 = vmatprep.subr.mxu0 0.0
      %226 = vmatpush2.msra.mxu0 0.0
      %227 = vmatprep.subr.mxu0 0.0
      %228 = vmatpush2.msra.mxu0 0.0
      %229 = vmatprep.subr.mxu0 0.0
      %230 = vmatpush2.msra.mxu0 0.0
      %231 = vmatprep.subr.mxu0 0.0
      %232 = vmatpush2.msra.mxu0 0.0
      %233 = vmatprep.subr.mxu0 0.0
      %234 = vmatpush2.msra.mxu0 0.0
      %235 = vmatprep.subr.mxu0 0.0
      %236 = vmatpush2.msra.mxu0 0.0
      %237 = vmatprep.subr.mxu0 0.0
      %238 = vmatpush2.msra.mxu0 0.0
      %239 = vmatprep.subr.mxu0 0.0
      %240 = vmatpush2.msra.mxu0 0.0
      %241 = vmatprep.subr.mxu0 0.0
      %242 = vmatpush2.msra.mxu0 0.0
      %243 = vmatprep.subr.mxu0 0.0
      %244 = vmatpush2.msra.mxu0 0.0
      %245 = vmatprep.subr.mxu0 0.0
      %246 = vmatpush2.msra.mxu0 0.0
      %247 = vmatprep.subr.mxu0 0.0
      %248 = vmatpush2.msra.mxu0 0.0
      %249 = vmatprep.subr.mxu0 0.0
      %250 = vmatpush2.msra.mxu0 0.0
      %251 = vmatprep.subr.mxu0 0.0
      %252 = vmatpush2.msra.mxu0 0.0
      %253 = vmatprep.subr.mxu0 0.0
      %254 = vmatpush2.msra.mxu0 0.0
      %255 = vmatprep.mubr.f32.mxu0 0.0
      %256 = vmatmul.mubr.f32.gmra.mxu0 %v186
      %v257 = vpop.f32.mrf.mxu0
      %v258 = vadd.f32 %v183, %v257
      %v259 = vpop.f32.mrf.mxu0
      %260 = vdwg.mxu0
      %v261 = vxor.u32 %v258, 2147483648
      %v262 = vmul.f32 %v261, 1.442695
      %v263 = vpow.pop %v262
      %v264 = vadd.f32 %v263, 1.0
      %v265 = vrcp.pop %v264
      %v266 = vmul.f32 1.0, %v265
      %268 = vset.pattern.permute.xlu0 0
      %269 = vperm.xlu0 %268, %v266
      %v270 = vpop.permute.xlu0 %269
      %v272 = vunpack.c.l.s4 839922192
      %v273 = vunpack.c.0.s8 %v272
      %v274 = vlaneseq
      %v275 = vshrl.u32 %v274, 7
      %v276 = vsub.s32 %v273, %v275
      %v277 = vrot.slane %v270, %v276
      %v279 = vmul.f32 %v171, %v277
      %280 = vst [vmem:[%s170] sm:$0xff] %v279
      %p281 = scmp.lt.s32.totalorder %s14, 1
      %s282 = scalar_select %p281, %s14, 1
      %s283 = smul.addr %s282, 2
      %s284 = smul.addr %s283, 4
      %s285 = scalar_lea.vmem %s3, %s284
      // Predicated region
      $region33: #{se_gating.1} parent=31 // pred_check
        %p286 = pneg %p100
      $region34: #{se_gating.1} parent=31 // pred_check_branch
        %288 = sbr.rel (%p286) target = $region36
      $region35: #{se_gating.1} parent=31 // pred_region
        _
      $region36: #{se_gating.1} parent=31 // pred_fallthru
        _
    $region32: #{se_gating.1} parent=5 // pred_fallthru
      _
    %p289 = scmp.le.s32.totalorder 2, %s9
    // Predicated region
    $region37: #{se_gating.1} parent=5 // pred_check
      %p290 = pneg %p289
    $region38: #{se_gating.1} parent=5 // pred_check_branch
      %292 = sbr.rel (%p290) target = $region40
    $region39: #{se_gating.1} parent=5 // pred_region
      %s293 = ssub.s32 %s9, 2
      // Predicated region
      $region41: #{se_gating.1} parent=39 // pred_check
        %p294 = pneg %p106
      $region42: #{se_gating.1} parent=39 // pred_check_branch
        %296 = sbr.rel (%p294) target = $region44
      $region43: #{se_gating.1} parent=39 // pred_region
        %p297 = scmp.lt.s32.totalorder %s15, 1
        %s298 = scalar_select %p297, %s15, 1
        %s299 = smul.addr %s298, 2
        %s300 = smul.addr %s299, 4
        %s301 = scalar_lea.vmem %s3, %s300
      $region44: #{se_gating.1} parent=39 // pred_fallthru
        _
    $region40: #{se_gating.1} parent=5 // pred_fallthru
      _
  $region6: #{se_gating.1} parent=0 // loop_footer
    %s13 = sadd.s32 1, %s9
  $region7: #{se_gating.1} parent=0 // loop_footer_branch
    %8 = sbr.rel target = $region3
  $region8: #{se_gating.1} parent=0 // loop_exit
    _

</llo_original>
